<compile_context>
chip_gen: v7x
topology: tpu7x:2x2x1
jax: 0.10.0
libtpu: 0.0.40
codegen_flags: <defaults>
</compile_context>

<pallas_src>
import functools

import jax
import jax.numpy as jnp
from jax.experimental import pallas as pl
from jax.experimental.pallas import tpu as pltpu


# ----------------------------------------------------------------------------- 
# Generation-aware VMEM budget.
# -----------------------------------------------------------------------------
def _vmem_capacity_bytes():
    """Physical VMEM per TensorCore (128 MiB v5e/v6e, 64 MiB v7x)."""
    try:
        info = pltpu.get_tpu_info()
        cap = getattr(info, "vmem_capacity_bytes", None)
        if cap:
            return int(cap)
    except Exception:
        pass
    return 64 * 1024 * 1024  # conservative default (v7x per-TC VMEM)


def _spatial_tiles(S):
    """Lane-dense (multiple-of-128) divisors of S, ascending; else just [S]."""
    tiles = [d for d in range(128, S + 1, 128) if S % d == 0]
    return tiles or [S]


def _pick_bt(b, unit_bytes, budget, target):
    """Pick a batch tile bt | b with bt*unit_bytes <= budget.

    Grows bt only while the block footprint is below `target` bytes, and keeps
    at least two grid steps along the batch axis (megacore sharding on v7x and
    DMA/compute pipelining) whenever b > 1.  Returns None if even bt=1 does not
    fit the budget.
    """
    cap = 1 if b <= 1 else b // 2
    cap = max(cap, 1)
    best = None
    for d in range(1, b + 1):
        if b % d:
            continue
        if d > cap:
            break
        if d * unit_bytes > budget:
            break
        best = d
        if d * unit_bytes >= target:
            break
    return best


# ----------------------------------------------------------------------------- 
# Kernels
# -----------------------------------------------------------------------------
def _fused_kernel(inv_spatial, x_ref, w1_ref, w2_ref, o_ref):
    # x_ref/o_ref: (bt, n, S) lane-dense slab of `bt` batch rows.
    # w1_ref: (n, h) = fc1.weight.T ; w2_ref: (h, n) = fc2.weight.T
    xv = x_ref[...]
    # Squeeze: f32-accumulated mean over the lane-dense spatial axis.
    y = jnp.sum(xv, axis=-1, dtype=jnp.float32) * inv_spatial            # (bt, n)
    # Excitation: two tiny MXU matmuls + ReLU + sigmoid.
    h = jnp.maximum(
        jnp.dot(y, w1_ref[...], preferred_element_type=jnp.float32), 0.0)
    z = jnp.dot(h, w2_ref[...], preferred_element_type=jnp.float32)      # (bt, n)
    g = 1.0 / (1.0 + jnp.exp(-z))                                        # sigmoid
    # Scale: multiply in the input dtype (only the tiny gate is cast).
    o_ref[...] = xv * g[:, :, None].astype(xv.dtype)


def _gate_kernel(inv_spatial, x_ref, w1_ref, w2_ref, gate_ref, acc_ref):
    # Two-pass fallback, pass 1.
    # grid = (b_tiles, s_tiles); spatial reduction axis is last ("arbitrary").
    si = pl.program_id(1)

    @pl.when(si == 0)
    def _():
        acc_ref[...] = jnp.zeros_like(acc_ref)

    # f32-accumulated partial sum over this lane-dense spatial tile.
    acc_ref[...] += jnp.sum(x_ref[...], axis=-1, dtype=jnp.float32)      # (bt, n)

    @pl.when(si == pl.num_programs(1) - 1)
    def _():
        y = acc_ref[...] * inv_spatial                                   # (bt, n)
        h = jnp.maximum(
            jnp.dot(y, w1_ref[...], preferred_element_type=jnp.float32), 0.0)
        z = jnp.dot(h, w2_ref[...], preferred_element_type=jnp.float32)
        gate_ref[...] = (1.0 / (1.0 + jnp.exp(-z)))[:, :, None]          # (bt, n, 1)


def _scale_kernel(x_ref, gate_ref, o_ref):
    # Two-pass fallback, pass 2: lane-dense broadcast multiply.
    # x_ref: (bt, n, ts); gate_ref: (bt, n, 1) f32; o_ref: (bt, n, ts)
    o_ref[...] = x_ref[...] * gate_ref[...].astype(x_ref.dtype)


# ----------------------------------------------------------------------------- 
# Wrapper
# -----------------------------------------------------------------------------
def spatial_se(x, w1_t, w2_t, *, force_two_pass=False):
    """SpatialSE forward.

    x    : (b, n, t, c)
    w1_t : (n, h)  = fc1.weight.T
    w2_t : (h, n)  = fc2.weight.T
    """
    b, n, t, c = x.shape
    hdim = w1_t.shape[1]
    S = t * c
    itemsize = jnp.dtype(x.dtype).itemsize
    inv_spatial = 1.0 / float(S)

    # Lane-dense view of x: trailing axis S = t*c.
    x2 = x.reshape(b, n, S)

    vmem_cap = _vmem_capacity_bytes()
    # Raise the scoped VMEM limit explicitly (defaults are 16/32 MiB) while
    # leaving headroom for compiler internals under the physical capacity.
    vmem_limit = int(min(vmem_cap * 3 // 4, vmem_cap - (8 << 20)))
    vmem_limit = max(vmem_limit, 16 << 20)
    # Bytes the pipelined data blocks may consume (~50% headroom under limit).
    budget = vmem_limit // 2

    # Two tiny weight matrices, double-buffered by the pipeline.
    weight_bytes = 2 * 2 * n * hdim * jnp.dtype(jnp.float32).itemsize
    row_bytes = n * S * itemsize          # one batch row, one buffer

    # ---------------- fused single-pass path (read x once, write once) --------
    bt = None
    if not force_two_pass:
        # Per block: input + output, each double-buffered -> 4 * bt * row_bytes.
        bt = _pick_bt(b, 4 * row_bytes, budget - weight_bytes, target=16 << 20)

    if bt is not None:
        out = pl.pallas_call(
            functools.partial(_fused_kernel, inv_spatial),
            out_shape=jax.ShapeDtypeStruct((b, n, S), x.dtype),
            grid_spec=pltpu.PrefetchScalarGridSpec(
                num_scalar_prefetch=0,
                grid=(b // bt,),
                in_specs=[
                    pl.BlockSpec((bt, n, S), lambda bi: (bi, 0, 0)),
                    pl.BlockSpec((n, hdim), lambda bi: (0, 0)),
                    pl.BlockSpec((hdim, n), lambda bi: (0, 0)),
                ],
                out_specs=pl.BlockSpec((bt, n, S), lambda bi: (bi, 0, 0)),
            ),
            compiler_params=pltpu.CompilerParams(
                dimension_semantics=("parallel",),
                vmem_limit_bytes=vmem_limit),
        )(x2, w1_t, w2_t)
        return out.reshape(b, n, t, c)

    # ---------------- two-pass fallback (per-row slab too big for VMEM) -------
    tiles = _spatial_tiles(S)

    # pass 1: pooled sums + excitation -> gate (b, n, 1), streamed over spatial.
    ts1 = None
    for t_ in tiles:                      # largest lane-dense tile that fits
        if 2 * n * t_ * itemsize <= budget - weight_bytes:
            ts1 = t_
        else:
            break
    if ts1 is None:
        ts1 = tiles[0]                    # smallest legal tile (may still be big
                                          # for pathological unaligned shapes)
    bt1 = _pick_bt(b, 2 * n * ts1 * itemsize, budget - weight_bytes,
                   target=4 << 20) or 1

    gate = pl.pallas_call(
        functools.partial(_gate_kernel, inv_spatial),
        out_shape=jax.ShapeDtypeStruct((b, n, 1), jnp.float32),
        grid_spec=pltpu.PrefetchScalarGridSpec(
            num_scalar_prefetch=0,
            grid=(b // bt1, S // ts1),
            in_specs=[
                pl.BlockSpec((bt1, n, ts1), lambda bi, si: (bi, 0, si)),
                pl.BlockSpec((n, hdim), lambda bi, si: (0, 0)),
                pl.BlockSpec((hdim, n), lambda bi, si: (0, 0)),
            ],
            out_specs=pl.BlockSpec((bt1, n, 1), lambda bi, si: (bi, 0, 0)),
            scratch_shapes=[pltpu.VMEM((bt1, n), jnp.float32)],
        ),
        compiler_params=pltpu.CompilerParams(
            dimension_semantics=("parallel", "arbitrary"),
            vmem_limit_bytes=vmem_limit),
    )(x2, w1_t, w2_t)

    # pass 2: tiled broadcast multiply (HBM-bound), blocks sized by bytes.
    ts2 = None
    for t_ in tiles:                      # input + output, double-buffered
        if 4 * n * t_ * itemsize <= budget:
            ts2 = t_
        else:
            break
    if ts2 is None:
        ts2 = tiles[0]
    bt2 = _pick_bt(b, 4 * n * ts2 * itemsize, budget, target=8 << 20) or 1

    # TODO(synk): when the caller allows in-place update of x, add
    # input_output_aliases={0: 0} here to save the output HBM allocation.
    scaled = pl.pallas_call(
        _scale_kernel,
        out_shape=jax.ShapeDtypeStruct((b, n, S), x.dtype),
        grid_spec=pltpu.PrefetchScalarGridSpec(
            num_scalar_prefetch=0,
            grid=(b // bt2, S // ts2),
            in_specs=[
                pl.BlockSpec((bt2, n, ts2), lambda bi, si: (bi, 0, si)),
                pl.BlockSpec((bt2, n, 1), lambda bi, si: (bi, 0, 0)),
            ],
            out_specs=pl.BlockSpec((bt2, n, ts2), lambda bi, si: (bi, 0, si)),
        ),
        compiler_params=pltpu.CompilerParams(
            dimension_semantics=("parallel", "parallel"),
            vmem_limit_bytes=vmem_limit),
    )(x2, gate)

    return scaled.reshape(b, n, t, c)


def reference(x, w1_t, w2_t):
    y = jnp.mean(x, axis=(2, 3))                  # (b, n)
    h = jnp.maximum(y @ w1_t, 0.0)
    s = jax.nn.sigmoid(h @ w2_t)
    return x * s[:, :, None, None]


if __name__ == "__main__":
    # Small shapes consistent with forward: x of size (b, n, t, c)
    b, n, t, c = 2, 8, 16, 16
    reduction = 1
    hdim = n // reduction

    key = jax.random.PRNGKey(0)
    kx, k1, k2 = jax.random.split(key, 3)

    x = jax.random.normal(kx, (b, n, t, c), dtype=jnp.float32)

    # Deterministic kaiming_normal_-style init: std = sqrt(2 / fan_in)
    # fc1.weight: (hdim, n), fan_in = n ; fc2.weight: (n, hdim), fan_in = hdim
    w1 = jax.random.normal(k1, (hdim, n), dtype=jnp.float32) * jnp.sqrt(2.0 / n)
    w2 = jax.random.normal(k2, (n, hdim), dtype=jnp.float32) * jnp.sqrt(2.0 / hdim)

    # Kernels take transposed weights so matmuls are y @ W.
    w1_t = w1.T   # (n, hdim)
    w2_t = w2.T   # (hdim, n)

    ref = reference(x, w1_t, w2_t)

    # Fused single-pass path (default for VMEM-resident slabs).
    out = jax.block_until_ready(spatial_se(x, w1_t, w2_t))
    assert out.shape == x.shape and out.dtype == x.dtype
    assert jnp.allclose(out, ref, atol=1e-5, rtol=1e-5), "fused path mismatch"

    # Two-pass fallback path (used when a per-row slab exceeds the VMEM budget).
    out2 = jax.block_until_ready(spatial_se(x, w1_t, w2_t, force_two_pass=True))
    assert out2.shape == x.shape and out2.dtype == x.dtype
    assert jnp.allclose(out2, ref, atol=1e-5, rtol=1e-5), "two-pass mismatch"

    # TODO(synk): the PyTorch forward also sets a global `attention_loss = 0`;
    # it has no effect on the returned tensor and is not reproduced here.
    print("KERNEL_OK")
</pallas_src>

<mosaic_0001>
module attributes {stable_mosaic.version = 11 : i64} {
  func.func @_fused_kernel(%arg0: i32, %arg1: memref<1x8x256xf32, #tpu.memory_space<vmem>>, %arg2: memref<8x8xf32, #tpu.memory_space<vmem>>, %arg3: memref<8x8xf32, #tpu.memory_space<vmem>>, %arg4: memref<1x8x256xf32, #tpu.memory_space<vmem>>) attributes {dimension_semantics = [#tpu.dimension_semantics<parallel>], iteration_bounds = array<i64: 2>, scalar_prefetch = 0 : i64, scratch_operands = 0 : i64, tpu.core_type = #tpu.core_type<tc>, window_params = [{transform_indices = @transform_0, window_bounds = array<i64: 1, 8, 256>}, {pipeline_mode = #tpu.pipeline_mode<synchronous>, transform_indices = @transform_1, window_bounds = array<i64: 8, 8>}, {pipeline_mode = #tpu.pipeline_mode<synchronous>, transform_indices = @transform_2, window_bounds = array<i64: 8, 8>}, {transform_indices = @transform_3, window_bounds = array<i64: 1, 8, 256>}]} {
    %c0 = arith.constant 0 : index
    %c0_0 = arith.constant 0 : index
    %c0_1 = arith.constant 0 : index
    %0 = vector.load %arg1[%c0, %c0_0, %c0_1] : memref<1x8x256xf32, #tpu.memory_space<vmem>>, vector<1x8x256xf32>
    %cst = arith.constant dense<0.000000e+00> : vector<1x8xf32>
    %1 = vector.multi_reduction <add>, %0, %cst [2] : vector<1x8x256xf32> to vector<1x8xf32>
    %cst_2 = arith.constant 3.906250e-03 : f32
    %2 = vector.broadcast %cst_2 : f32 to vector<1x8xf32>
    %3 = arith.mulf %1, %2 : vector<1x8xf32>
    %c0_3 = arith.constant 0 : index
    %c0_4 = arith.constant 0 : index
    %4 = vector.load %arg2[%c0_3, %c0_4] : memref<8x8xf32, #tpu.memory_space<vmem>>, vector<8x8xf32>
    %cst_5 = arith.constant dense<0.000000e+00> : vector<1x8xf32>
    %5 = tpu.matmul %3, %4, %cst_5 {dimension_numbers = #tpu.dot_dimension_numbers<[1], [0], [0], [1], [0, 0, 1, 1], [], []>} : vector<1x8xf32>, vector<8x8xf32>, vector<1x8xf32> -> vector<1x8xf32>
    %cst_6 = arith.constant 0.000000e+00 : f32
    %6 = vector.broadcast %cst_6 : f32 to vector<1x8xf32>
    %7 = arith.maximumf %5, %6 : vector<1x8xf32>
    %c0_7 = arith.constant 0 : index
    %c0_8 = arith.constant 0 : index
    %8 = vector.load %arg3[%c0_7, %c0_8] : memref<8x8xf32, #tpu.memory_space<vmem>>, vector<8x8xf32>
    %cst_9 = arith.constant dense<0.000000e+00> : vector<1x8xf32>
    %9 = tpu.matmul %7, %8, %cst_9 {dimension_numbers = #tpu.dot_dimension_numbers<[1], [0], [0], [1], [0, 0, 1, 1], [], []>} : vector<1x8xf32>, vector<8x8xf32>, vector<1x8xf32> -> vector<1x8xf32>
    %cst_10 = arith.constant 0.000000e+00 : f32
    %10 = vector.broadcast %cst_10 : f32 to vector<1x8xf32>
    %11 = arith.subf %10, %9 : vector<1x8xf32>
    %12 = math.exp %11 : vector<1x8xf32>
    %cst_11 = arith.constant 1.000000e+00 : f32
    %13 = vector.broadcast %cst_11 : f32 to vector<1x8xf32>
    %14 = arith.addf %13, %12 : vector<1x8xf32>
    %cst_12 = arith.constant 1.000000e+00 : f32
    %15 = vector.broadcast %cst_12 : f32 to vector<1x8xf32>
    %16 = arith.divf %15, %14 : vector<1x8xf32>
    %17 = vector.shape_cast %16 : vector<1x8xf32> to vector<1x8x1xf32>
    %18 = vector.broadcast %17 : vector<1x8x1xf32> to vector<1x8x256xf32>
    %19 = arith.mulf %0, %18 : vector<1x8x256xf32>
    %c0_13 = arith.constant 0 : index
    %c0_14 = arith.constant 0 : index
    %c0_15 = arith.constant 0 : index
    %20 = vector.load %arg4[%c0_13, %c0_14, %c0_15] : memref<1x8x256xf32, #tpu.memory_space<vmem>>, vector<1x8x256xf32>
    tpu.vector_store %arg4[%c0_13, %c0_14, %c0_15], %19 {strides = array<i32>} : memref<1x8x256xf32, #tpu.memory_space<vmem>>, vector<1x8x256xf32>,
    return
  }
  func.func @transform_0(%arg0: i32) -> (i32, i32, i32) {
    %c0_i32 = arith.constant 0 : i32
    %c0_i32_0 = arith.constant 0 : i32
    %c0_i32_1 = arith.constant 0 : i32
    return %arg0, %c0_i32, %c0_i32_0 : i32, i32, i32
  }
  func.func @transform_1(%arg0: i32) -> (i32, i32) {
    %c0_i32 = arith.constant 0 : i32
    %c0_i32_0 = arith.constant 0 : i32
    %c0_i32_1 = arith.constant 0 : i32
    return %c0_i32, %c0_i32_0 : i32, i32
  }
  func.func @transform_2(%arg0: i32) -> (i32, i32) {
    %c0_i32 = arith.constant 0 : i32
    %c0_i32_0 = arith.constant 0 : i32
    %c0_i32_1 = arith.constant 0 : i32
    return %c0_i32, %c0_i32_0 : i32, i32
  }
  func.func @transform_3(%arg0: i32) -> (i32, i32, i32) {
    %c0_i32 = arith.constant 0 : i32
    %c0_i32_0 = arith.constant 0 : i32
    %c0_i32_1 = arith.constant 0 : i32
    return %arg0, %c0_i32, %c0_i32_0 : i32, i32, i32
  }
}

</mosaic_0001>

<llo_original>
// kernel: tpu_custom_call.1
$region0: #{tpu_custom_call.1}
  #allocation0 [shape = 'u32[]', space=smem, size = 0x4, offset = 0x4, fixed_abs, tag = 'smem constant byte address 0x4 - core index']
  #allocation1 [shape = 'u32[144,128]{1,0:T(1,128)}', space=vmem, size = 0x12000, scoped, tag = 'internal scratch']
  %s0 = inlined_call_operand.hbm [shape: f32[2,8,256], index: 0, kind: input, shape index: {}]
  %s1 = inlined_call_operand.hbm [shape: f32[8,8], index: 1, kind: input, shape index: {}]
  %s2 = inlined_call_operand.hbm [shape: f32[8,8], index: 2, kind: input, shape index: {}]
  %s3 = inlined_call_operand.hbm [shape: f32[2,8,256], index: 3, kind: output, shape index: {}]
  %s4 = sld [smem:[#allocation0]]
  $region57: #{tpu_custom_call.1} parent=0
    _
  %s6 = ssub.s32 1, %s4
  %s7 = scalar_select 0, %s6, %s4
  $region1: #{tpu_custom_call.1} parent=0
    #allocation2 [shape = 'u8[16384]{0}', space=vmem, size = 0x4000, scoped, tag = 'input window, operand 0']
    #allocation3 [shape = 's32[2]{0}', space=sflag, size = 0x8, scoped, tag = 'scoped memory for tpu_custom_call.1']
    #allocation4 [shape = 's32[2]{0}', space=sflag, size = 0x8, scoped, tag = 'scoped memory for tpu_custom_call.1']
    #allocation5 [shape = 'u8[4096]{0}', space=vmem, size = 0x1000, scoped, tag = 'input window, operand 1, single buffered']
    #allocation6 [shape = 's32[1]{0}', space=sflag, size = 0x4, scoped, tag = 'scoped memory for tpu_custom_call.1']
    #allocation7 [shape = 'u8[4096]{0}', space=vmem, size = 0x1000, scoped, tag = 'input window, operand 2, single buffered']
    #allocation8 [shape = 'u8[16384]{0}', space=vmem, size = 0x4000, scoped, tag = 'output window, operand 0']
    %8 = vsyncpa [#allocation3], 0
    %s9 = scalar_lea.sflag [#allocation3], 1
    %10 = vsyncpa %s9, 0
    %11 = vsyncpa [#allocation6], 0
    %12 = vsyncpa [#allocation4], 0
    %s13 = scalar_lea.sflag [#allocation4], 1
    %14 = vsyncpa %s13, 0
    loop: start=0, step=1, limit=4
    $region2: #{tpu_custom_call.1} parent=1 // loop_pre_header
      _
    $region3: #{tpu_custom_call.1} parent=1 // loop_header
      %s16 = sphi 0, %s20
      %p17 = scmp.ge.s32.totalorder %s16, 4
      %s26 = sphi 0, %s28
      %s29 = sphi 0, %s26
      %s30 = sphi 0, %s29
      %s46 = sphi 0, %s30
      %s50 = sphi 0, %s50
      %s52 = sphi 0, %s50
      %s53 = sphi 0, %s52
      %s67 = sphi 0, %s53
      %s71 = sphi 0, %s71
      %s73 = sphi 0, %s71
      %s74 = sphi 0, %s73
      %s88 = sphi 0, %s74
      %s94 = sphi 0, %s96
      %s97 = sphi 0, %s94
      %s98 = sphi 0, %s97
      %s114 = sphi 0, %s98
    $region4: #{tpu_custom_call.1} parent=1 // loop_header_branch
      %19 = sbr.rel (%p17) target = $region8
    $region5: #{tpu_custom_call.1} parent=1 // loop_body
      %s21 = ssub.s32 %s16, 1
      %s22 = ssub.s32 %s16, 2
      %s23 = sadd.s32 %s16, 1
      %s24 = ssub.s32 %s16, %s23
      %p25 = scmp.eq.s32.totalorder %s24, 0
      %s27 = sadd.s32 %s26, 1
      %s28 = scalar_select %p25, %s26, %s27
      %p31 = pneg %p25
      %p32 = scmp.eq.s32.totalorder %s16, 1
      %p33 = por %p31, %p32
      %p34 = scmp.ne.s32.totalorder %s26, %s29
      %p35 = scmp.eq.s32.totalorder %s16, 0
      %p36 = por %p34, %p35
      %p37 = scmp.ne.s32.totalorder %s26, %s29
      %p38 = scmp.eq.s32.totalorder %s21, 1
      %p39 = por %p37, %p38
      %p40 = scmp.ne.s32.totalorder %s29, %s30
      %p41 = scmp.eq.s32.totalorder %s21, 0
      %p42 = por %p40, %p41
      %p43 = scmp.ne.s32.totalorder %s29, %s30
      %p44 = scmp.eq.s32.totalorder %s22, 1
      %p45 = por %p43, %p44
      %p47 = scmp.ne.s32.totalorder %s30, %s46
      %p48 = scmp.eq.s32.totalorder %s22, 0
      %p49 = por %p47, %p48
      %s51 = sadd.s32 %s50, 1
      %p54 = scmp.eq.s32.totalorder %s16, 1
      %p55 = scmp.ne.s32.totalorder %s50, %s52
      %p56 = scmp.eq.s32.totalorder %s16, 0
      %p57 = por %p55, %p56
      %p58 = scmp.ne.s32.totalorder %s50, %s52
      %p59 = scmp.eq.s32.totalorder %s21, 1
      %p60 = por %p58, %p59
      %p61 = scmp.ne.s32.totalorder %s52, %s53
      %p62 = scmp.eq.s32.totalorder %s21, 0
      %p63 = por %p61, %p62
      %p64 = scmp.ne.s32.totalorder %s52, %s53
      %p65 = scmp.eq.s32.totalorder %s22, 1
      %p66 = por %p64, %p65
      %p68 = scmp.ne.s32.totalorder %s53, %s67
      %p69 = scmp.eq.s32.totalorder %s22, 0
      %p70 = por %p68, %p69
      %s72 = sadd.s32 %s71, 1
      %p75 = scmp.eq.s32.totalorder %s16, 1
      %p76 = scmp.ne.s32.totalorder %s71, %s73
      %p77 = scmp.eq.s32.totalorder %s16, 0
      %p78 = por %p76, %p77
      %p79 = scmp.ne.s32.totalorder %s71, %s73
      %p80 = scmp.eq.s32.totalorder %s21, 1
      %p81 = por %p79, %p80
      %p82 = scmp.ne.s32.totalorder %s73, %s74
      %p83 = scmp.eq.s32.totalorder %s21, 0
      %p84 = por %p82, %p83
      %p85 = scmp.ne.s32.totalorder %s73, %s74
      %p86 = scmp.eq.s32.totalorder %s22, 1
      %p87 = por %p85, %p86
      %p89 = scmp.ne.s32.totalorder %s74, %s88
      %p90 = scmp.eq.s32.totalorder %s22, 0
      %p91 = por %p89, %p90
      %s92 = ssub.s32 %s16, %s23
      %p93 = scmp.eq.s32.totalorder %s92, 0
      %s95 = sadd.s32 %s94, 1
      %s96 = scalar_select %p93, %s94, %s95
      %p99 = pneg %p93
      %p100 = scmp.eq.s32.totalorder %s16, 1
      %p101 = por %p99, %p100
      %p102 = scmp.ne.s32.totalorder %s94, %s97
      %p103 = scmp.eq.s32.totalorder %s16, 0
      %p104 = por %p102, %p103
      %p105 = scmp.ne.s32.totalorder %s94, %s97
      %p106 = scmp.eq.s32.totalorder %s21, 1
      %p107 = por %p105, %p106
      %p108 = scmp.ne.s32.totalorder %s97, %s98
      %p109 = scmp.eq.s32.totalorder %s21, 0
      %p110 = por %p108, %p109
      %p111 = scmp.ne.s32.totalorder %s97, %s98
      %p112 = scmp.eq.s32.totalorder %s22, 1
      %p113 = por %p111, %p112
      %p115 = scmp.ne.s32.totalorder %s98, %s114
      %p116 = scmp.eq.s32.totalorder %s22, 0
      %p117 = por %p115, %p116
      %p118 = scmp.le.s32.totalorder 1, %s16
      %p119 = scmp.lt.s32.totalorder %s16, 3
      %p120 = pnand %p118, %p119
      %p121 = pneg %p120
      // Predicated region
      $region9: #{tpu_custom_call.1} parent=5 // pred_check
        _
      $region10: #{tpu_custom_call.1} parent=5 // pred_check_branch
        %123 = sbr.rel (%p120) target = $region12
      $region11: #{tpu_custom_call.1} parent=5 // pred_region
        %s124 = ssub.s32 %s16, 1
        // Predicated region
        $region13: #{tpu_custom_call.1} parent=11 // pred_check
          %p125 = pneg %p63
        $region14: #{tpu_custom_call.1} parent=11 // pred_check_branch
          %127 = sbr.rel (%p125) target = $region16
        $region15: #{tpu_custom_call.1} parent=11 // pred_region
          %s129 = ssub.s32 128, 128
          %130 = vsyncadd [#allocation6], %s129
          %s132 = sshll.u32 [#allocation5], 4
          %s133 = int_to_ptr.vmem [resolvable:$true] %s132
          %135 = dma.hbm_to_vmem [thread:$0]  %s1, 128, %s133, [#allocation6]
        $region16: #{tpu_custom_call.1} parent=11 // pred_fallthru
          _
        // Predicated region
        $region17: #{tpu_custom_call.1} parent=11 // pred_check
          %p136 = pneg %p84
        $region18: #{tpu_custom_call.1} parent=11 // pred_check_branch
          %138 = sbr.rel (%p136) target = $region20
        $region19: #{tpu_custom_call.1} parent=11 // pred_region
          %s140 = ssub.s32 128, 128
          %141 = vsyncadd [#allocation6], %s140
          %s143 = sshll.u32 [#allocation7], 4
          %s144 = int_to_ptr.vmem [resolvable:$true] %s143
          %146 = dma.hbm_to_vmem [thread:$0]  %s2, 128, %s144, [#allocation6]
        $region20: #{tpu_custom_call.1} parent=11 // pred_fallthru
          _
      $region12: #{tpu_custom_call.1} parent=5 // pred_fallthru
        _
      %p147 = scmp.lt.s32.totalorder %s16, 2
      // Predicated region
      $region21: #{tpu_custom_call.1} parent=5 // pred_check
        %p148 = pneg %p147
      $region22: #{tpu_custom_call.1} parent=5 // pred_check_branch
        %150 = sbr.rel (%p148) target = $region24
      $region23: #{tpu_custom_call.1} parent=5 // pred_region
        // Predicated region
        $region25: #{tpu_custom_call.1} parent=23 // pred_check
          %p151 = pneg %p36
        $region26: #{tpu_custom_call.1} parent=23 // pred_check_branch
          %153 = sbr.rel (%p151) target = $region28
        $region27: #{tpu_custom_call.1} parent=23 // pred_region
          %s154 = sand.u32 %s26, 1
          %s155 = scalar_lea.sflag [#allocation3], %s154
          %s156 = sand.u32 %s26, 1
          %s157 = smul.addr %s156, 16
          %s158 = scalar_lea.vmem [#allocation2], %s157
          %s160 = ssub.s32 256, 256
          %161 = vsyncadd %s155, %s160
          %s162 = smul.addr %s16, 2
          %s163 = smul.addr %s162, 128
          %s164 = scalar_lea.hbm %s0, %s163
          %s166 = sshll.u32 %s158, 4
          %s167 = int_to_ptr.vmem [resolvable:$true] %s166
          %169 = dma.hbm_to_vmem [thread:$0]  %s164, 256, %s167, %s155
        $region28: #{tpu_custom_call.1} parent=23 // pred_fallthru
          _
      $region24: #{tpu_custom_call.1} parent=5 // pred_fallthru
        _
      %p170 = scmp.le.s32.totalorder 1, %s16
      %p171 = scmp.lt.s32.totalorder %s16, 3
      %p172 = pnand %p170, %p171
      %p173 = pneg %p172
      // Predicated region
      $region29: #{tpu_custom_call.1} parent=5 // pred_check
        _
      $region30: #{tpu_custom_call.1} parent=5 // pred_check_branch
        %175 = sbr.rel (%p172) target = $region32
      $region31: #{tpu_custom_call.1} parent=5 // pred_region
        %s176 = ssub.s32 %s16, 1
        %s177 = sand.u32 %s29, 1
        %s178 = scalar_lea.sflag [#allocation3], %s177
        %s179 = sand.u32 %s29, 1
        %s180 = smul.addr %s179, 16
        %s181 = scalar_lea.vmem [#allocation2], %s180
        // Predicated region
        $region33: #{tpu_custom_call.1} parent=31 // pred_check
          %p182 = pneg %p42
        $region34: #{tpu_custom_call.1} parent=31 // pred_check_branch
          %184 = sbr.rel (%p182) target = $region36
        $region35: #{tpu_custom_call.1} parent=31 // pred_region
          %185 = dma.done %s178, 256
        $region36: #{tpu_custom_call.1} parent=31 // pred_fallthru
          _
        // Predicated region
        $region37: #{tpu_custom_call.1} parent=31 // pred_check
          %p186 = pneg %p63
        $region38: #{tpu_custom_call.1} parent=31 // pred_check_branch
          %188 = sbr.rel (%p186) target = $region40
        $region39: #{tpu_custom_call.1} parent=31 // pred_region
          %189 = dma.done [#allocation6], 128
        $region40: #{tpu_custom_call.1} parent=31 // pred_fallthru
          _
        // Predicated region
        $region41: #{tpu_custom_call.1} parent=31 // pred_check
          %p190 = pneg %p84
        $region42: #{tpu_custom_call.1} parent=31 // pred_check_branch
          %192 = sbr.rel (%p190) target = $region44
        $region43: #{tpu_custom_call.1} parent=31 // pred_region
          %193 = dma.done [#allocation6], 128
        $region44: #{tpu_custom_call.1} parent=31 // pred_fallthru
          _
        %s194 = sand.u32 %s29, 1
        %s195 = scalar_lea.sflag [#allocation3], %s194
        %s196 = sand.u32 %s29, 1
        %s197 = smul.addr %s196, 16
        %s198 = scalar_lea.vmem [#allocation2], %s197
        %p199 = pneg %p42
        %p200 = pneg %p39
        %p201 = pneg %p63
        %p202 = pneg %p60
        %p203 = pneg %p84
        %p204 = pneg %p81
        %p205 = pneg %p110
        %p206 = pneg %p107
        %s207 = sand.u32 %s97, 1
        %s208 = scalar_lea.sflag [#allocation4], %s207
        %s209 = sand.u32 %s97, 1
        %s210 = smul.addr %s209, 16
        %s211 = scalar_lea.vmem [#allocation8], %s210
        %v212 = vld [vmem:[%s181] sm:$0xff]
        %v213 = vld [vmem:[%s181 + $0x8] sm:$0xff]
        %v214 = vadd.f32 %v212, %v213
        %215 = vadd.xlane.f32.xlu0 %v214
        %v216 = vpop.xlane.xlu0 %215
        %v217 = vmul.f32 %v216, 0.00390625
        %v218 = vld [vmem:[#allocation5] sm:$0xff]
        %v220 = vlaneseq
        %v221 = vand.u32 %v220, 127
        %v222 = vlaneseq
        %v223 = vshrl.u32 %v222, 7
        %v224 = vsub.s32 %v221, %v223
        %v225 = vrot.slane %v217, %v224
        %vm226 = vcmask 64512
        %v227 = vsel %vm226, %v225, 0
        %229 = vmatprep.subr.mxu0 0.0
        %230 = vmatpush1.msra.mxu0 %v218
        %231 = vmatprep.subr.mxu0 0.0
        %232 = vmatpush1.msra.mxu0 0.0
        %233 = vmatprep.subr.mxu0 0.0
        %234 = vmatpush1.msra.mxu0 0.0
        %235 = vmatprep.subr.mxu0 0.0
        %236 = vmatpush1.msra.mxu0 0.0
        %237 = vmatprep.subr.mxu0 0.0
        %238 = vmatpush1.msra.mxu0 0.0
        %239 = vmatprep.subr.mxu0 0.0
        %240 = vmatpush1.msra.mxu0 0.0
        %241 = vmatprep.subr.mxu0 0.0
        %242 = vmatpush1.msra.mxu0 0.0
        %243 = vmatprep.subr.mxu0 0.0
        %244 = vmatpush1.msra.mxu0 0.0
        %245 = vmatprep.subr.mxu0 0.0
        %246 = vmatpush1.msra.mxu0 0.0
        %247 = vmatprep.subr.mxu0 0.0
        %248 = vmatpush1.msra.mxu0 0.0
        %249 = vmatprep.subr.mxu0 0.0
        %250 = vmatpush1.msra.mxu0 0.0
        %251 = vmatprep.subr.mxu0 0.0
        %252 = vmatpush1.msra.mxu0 0.0
        %253 = vmatprep.subr.mxu0 0.0
        %254 = vmatpush1.msra.mxu0 0.0
        %255 = vmatprep.subr.mxu0 0.0
        %256 = vmatpush1.msra.mxu0 0.0
        %257 = vmatprep.subr.mxu0 0.0
        %258 = vmatpush1.msra.mxu0 0.0
        %259 = vmatprep.subr.mxu0 0.0
        %260 = vmatpush1.msra.mxu0 0.0
        %261 = vmatprep.subr.mxu0 0.0
        %262 = vmatpush1.msra.mxu0 0.0
        %263 = vmatprep.subr.mxu0 0.0
        %264 = vmatpush1.msra.mxu0 0.0
        %265 = vmatprep.subr.mxu0 0.0
        %266 = vmatpush1.msra.mxu0 0.0
        %267 = vmatprep.subr.mxu0 0.0
        %268 = vmatpush1.msra.mxu0 0.0
        %269 = vmatprep.subr.mxu0 0.0
        %270 = vmatpush1.msra.mxu0 0.0
        %271 = vmatprep.subr.mxu0 0.0
        %272 = vmatpush1.msra.mxu0 0.0
        %273 = vmatprep.subr.mxu0 0.0
        %274 = vmatpush1.msra.mxu0 0.0
        %275 = vmatprep.subr.mxu0 0.0
        %276 = vmatpush1.msra.mxu0 0.0
        %277 = vmatprep.subr.mxu0 0.0
        %278 = vmatpush1.msra.mxu0 0.0
        %279 = vmatprep.subr.mxu0 0.0
        %280 = vmatpush1.msra.mxu0 0.0
        %281 = vmatprep.subr.mxu0 0.0
        %282 = vmatpush1.msra.mxu0 0.0
        %283 = vmatprep.subr.mxu0 0.0
        %284 = vmatpush1.msra.mxu0 0.0
        %285 = vmatprep.subr.mxu0 0.0
        %286 = vmatpush1.msra.mxu0 0.0
        %287 = vmatprep.subr.mxu0 0.0
        %288 = vmatpush1.msra.mxu0 0.0
        %289 = vmatprep.subr.mxu0 0.0
        %290 = vmatpush1.msra.mxu0 0.0
        %291 = vmatprep.subr.mxu0 0.0
        %292 = vmatpush1.msra.mxu0 0.0
        %293 = vmatprep.mubr.f32.mxu0 0.0
        %294 = vmatmul.mubr.f32.gmra.mrb[0].mxu0 %v227
        %v295 = vpop.f32.mrb[0].mxu0
        %v296 = vadd.f32 0.0, %v295
        %v297 = vpop.f32.mrb[0].mxu0
        %298 = vdwg.mxu0
        %v299 = vmax.f32 %v296, 0.0
        %v300 = vld [vmem:[#allocation7] sm:$0xff]
        %v302 = vsel %vm226, %v299, 0
        %304 = vmatprep.subr.mxu0 0.0
        %305 = vmatpush1.msra.mxu0 %v300
        %306 = vmatprep.subr.mxu0 0.0
        %307 = vmatpush1.msra.mxu0 0.0
        %308 = vmatprep.subr.mxu0 0.0
        %309 = vmatpush1.msra.mxu0 0.0
        %310 = vmatprep.subr.mxu0 0.0
        %311 = vmatpush1.msra.mxu0 0.0
        %312 = vmatprep.subr.mxu0 0.0
        %313 = vmatpush1.msra.mxu0 0.0
        %314 = vmatprep.subr.mxu0 0.0
        %315 = vmatpush1.msra.mxu0 0.0
        %316 = vmatprep.subr.mxu0 0.0
        %317 = vmatpush1.msra.mxu0 0.0
        %318 = vmatprep.subr.mxu0 0.0
        %319 = vmatpush1.msra.mxu0 0.0
        %320 = vmatprep.subr.mxu0 0.0
        %321 = vmatpush1.msra.mxu0 0.0
        %322 = vmatprep.subr.mxu0 0.0
        %323 = vmatpush1.msra.mxu0 0.0
        %324 = vmatprep.subr.mxu0 0.0
        %325 = vmatpush1.msra.mxu0 0.0
        %326 = vmatprep.subr.mxu0 0.0
        %327 = vmatpush1.msra.mxu0 0.0
        %328 = vmatprep.subr.mxu0 0.0
        %329 = vmatpush1.msra.mxu0 0.0
        %330 = vmatprep.subr.mxu0 0.0
        %331 = vmatpush1.msra.mxu0 0.0
        %332 = vmatprep.subr.mxu0 0.0
        %333 = vmatpush1.msra.mxu0 0.0
        %334 = vmatprep.subr.mxu0 0.0
        %335 = vmatpush1.msra.mxu0 0.0
        %336 = vmatprep.subr.mxu0 0.0
        %337 = vmatpush1.msra.mxu0 0.0
        %338 = vmatprep.subr.mxu0 0.0
        %339 = vmatpush1.msra.mxu0 0.0
        %340 = vmatprep.subr.mxu0 0.0
        %341 = vmatpush1.msra.mxu0 0.0
        %342 = vmatprep.subr.mxu0 0.0
        %343 = vmatpush1.msra.mxu0 0.0
        %344 = vmatprep.subr.mxu0 0.0
        %345 = vmatpush1.msra.mxu0 0.0
        %346 = vmatprep.subr.mxu0 0.0
        %347 = vmatpush1.msra.mxu0 0.0
        %348 = vmatprep.subr.mxu0 0.0
        %349 = vmatpush1.msra.mxu0 0.0
        %350 = vmatprep.subr.mxu0 0.0
        %351 = vmatpush1.msra.mxu0 0.0
        %352 = vmatprep.subr.mxu0 0.0
        %353 = vmatpush1.msra.mxu0 0.0
        %354 = vmatprep.subr.mxu0 0.0
        %355 = vmatpush1.msra.mxu0 0.0
        %356 = vmatprep.subr.mxu0 0.0
        %357 = vmatpush1.msra.mxu0 0.0
        %358 = vmatprep.subr.mxu0 0.0
        %359 = vmatpush1.msra.mxu0 0.0
        %360 = vmatprep.subr.mxu0 0.0
        %361 = vmatpush1.msra.mxu0 0.0
        %362 = vmatprep.subr.mxu0 0.0
        %363 = vmatpush1.msra.mxu0 0.0
        %364 = vmatprep.subr.mxu0 0.0
        %365 = vmatpush1.msra.mxu0 0.0
        %366 = vmatprep.subr.mxu0 0.0
        %367 = vmatpush1.msra.mxu0 0.0
        %368 = vmatprep.mubr.f32.mxu0 0.0
        %369 = vmatmul.mubr.f32.gmra.mrb[0].mxu0 %v302
        %v370 = vpop.f32.mrb[0].mxu0
        %v371 = vadd.f32 0.0, %v370
        %v372 = vpop.f32.mrb[0].mxu0
        %373 = vdwg.mxu0
        %v374 = vsub.f32 0.0, %v371
        %v375 = vmul.f32 %v374, 1.442695
        %v376 = vpow.pop %v375
        %v377 = vadd.f32 %v376, 1.0
        %v378 = vrcp.pop %v377
        %v379 = vmul.f32 1.0, %v378
        %v380 = vlaneseq
        %v381 = vshrl.u32 %v380, 7
        %v382 = vsub.s32 0, %v381
        %v383 = vrot.slane %v379, %v382
        %385 = vbcast.lane.b32.xlu0 %v383, 256
        %v386 = vpop.permute.xlu0 %385
        %v387 = vmul.f32 %v212, %v386
        %v388 = vmul.f32 %v213, %v386
        %389 = vst [vmem:[%s211] sm:$0xff] %v387
        %390 = vst [vmem:[%s211 + $0x8] sm:$0xff] %v388
        %s391 = sand.u32 %s97, 1
        %s392 = scalar_lea.sflag [#allocation4], %s391
        %s393 = sand.u32 %s97, 1
        %s394 = smul.addr %s393, 16
        %s395 = scalar_lea.vmem [#allocation8], %s394
        // Predicated region
        $region45: #{tpu_custom_call.1} parent=31 // pred_check
          %p396 = pneg %p107
        $region46: #{tpu_custom_call.1} parent=31 // pred_check_branch
          %398 = sbr.rel (%p396) target = $region48
        $region47: #{tpu_custom_call.1} parent=31 // pred_region
          %s400 = ssub.s32 256, 256
          %401 = vsyncadd %s392, %s400
          %s402 = smul.addr %s21, 2
          %s403 = smul.addr %s402, 128
          %s404 = scalar_lea.hbm %s3, %s403
          %s406 = sshll.u32 %s395, 4
          %s407 = int_to_ptr.vmem [resolvable:$true] %s406
          %409 = dma.vmem_to_hbm [thread:$0]  %s407, 256, %s404, %s392
        $region48: #{tpu_custom_call.1} parent=31 // pred_fallthru
          _
      $region32: #{tpu_custom_call.1} parent=5 // pred_fallthru
        _
      %p410 = scmp.le.s32.totalorder 2, %s16
      // Predicated region
      $region49: #{tpu_custom_call.1} parent=5 // pred_check
        %p411 = pneg %p410
      $region50: #{tpu_custom_call.1} parent=5 // pred_check_branch
        %413 = sbr.rel (%p411) target = $region52
      $region51: #{tpu_custom_call.1} parent=5 // pred_region
        %s414 = ssub.s32 %s16, 2
        // Predicated region
        $region53: #{tpu_custom_call.1} parent=51 // pred_check
          %p415 = pneg %p113
        $region54: #{tpu_custom_call.1} parent=51 // pred_check_branch
          %417 = sbr.rel (%p415) target = $region56
        $region55: #{tpu_custom_call.1} parent=51 // pred_region
          %s418 = sand.u32 %s98, 1
          %s419 = scalar_lea.sflag [#allocation4], %s418
          %s420 = sand.u32 %s98, 1
          %s421 = smul.addr %s420, 16
          %s422 = scalar_lea.vmem [#allocation8], %s421
          %423 = dma.done %s419, 256
        $region56: #{tpu_custom_call.1} parent=51 // pred_fallthru
          _
      $region52: #{tpu_custom_call.1} parent=5 // pred_fallthru
        _
    $region6: #{tpu_custom_call.1} parent=1 // loop_footer
      %s20 = sadd.s32 1, %s16
    $region7: #{tpu_custom_call.1} parent=1 // loop_footer_branch
      %15 = sbr.rel target = $region3
    $region8: #{tpu_custom_call.1} parent=1 // loop_exit
      _
    %424 = vsyncpa [#allocation3], 1
    %s425 = scalar_lea.sflag [#allocation3], 1
    %426 = vsyncpa %s425, 1
    %427 = vsyncpa [#allocation6], 1
    %428 = vsyncpa [#allocation4], 1
    %s429 = scalar_lea.sflag [#allocation4], 1
    %430 = vsyncpa %s429, 1

</llo_original>
